<compile_context>
chip_gen: v7x
topology: tpu7x:2x2x1
jax: 0.10.0
libtpu: 0.0.40
codegen_flags: <defaults>
</compile_context>

<pallas_src>
import functools

import jax
import jax.numpy as jnp
from jax import lax
from jax.experimental import pallas as pl
from jax.experimental.pallas import tpu as pltpu

_LANES = 128
_SUBLANES = 8
_CH = 512                               # rows per in-kernel accumulation chunk
_TARGET_BLOCK_BYTES = 8 * 1024 * 1024   # per-input block target (large path)
_SMALL_MAX_ROWS = 2048                  # rows/batch-row <= this -> packed path
_PACK_TARGET_ROWS = 8192                # rows per block in the packed path
_VMEM_LIMIT_BYTES = 44 * 1024 * 1024


def _ceil_div(a, b):
    return -(-a // b)


def _round_up(a, b):
    return _ceil_div(a, b) * b


# --------------------------------------------------------------------------
# Large (streaming) path: grid (B, K), per-batch-row running max / SSE.
# --------------------------------------------------------------------------
def _psnr_large_kernel(x_ref, t_ref, o_ref, max_acc, sse_acc, *,
                       n_valid, needs_mask, last_valid):
    # x_ref / t_ref: (1, tr, 128) block of one flattened, lane-padded batch
    # row.  Grid = (batch, reduction step); accumulators persist across k.
    k = pl.program_id(1)
    tr = x_ref.shape[1]
    n_chunks = tr // _CH                      # static python int

    @pl.when(k == 0)
    def _():
        max_acc[...] = jnp.full(max_acc.shape, -jnp.inf, dtype=max_acc.dtype)
        sse_acc[...] = jnp.zeros(sse_acc.shape, dtype=sse_acc.dtype)

    def accum_chunk(row0):
        # Unmasked accumulate of rows [row0, row0 + _CH): pure VPU max/add
        # into the (8,128) accumulators.
        x = x_ref[0, pl.ds(row0, _CH), :].astype(jnp.float32)
        t = t_ref[0, pl.ds(row0, _CH), :].astype(jnp.float32)
        d = x - t
        max_acc[...] = jnp.maximum(
            max_acc[...],
            jnp.max(x.reshape(_CH // _SUBLANES, _SUBLANES, _LANES), axis=0))
        sse_acc[...] = sse_acc[...] + jnp.sum(
            (d * d).reshape(_CH // _SUBLANES, _SUBLANES, _LANES), axis=0)

    def accum_chunk_loop(num_chunks):
        if num_chunks <= 0:
            return

        def body(c, carry):
            accum_chunk(pl.multiple_of(c * _CH, _CH))
            return carry

        lax.fori_loop(0, num_chunks, body, 0)

    if not needs_mask:
        accum_chunk_loop(n_chunks)
    else:
        # Only the final block can contain lane padding or out-of-bounds
        # rows; every other block takes the unmasked fast path.
        @pl.when(k != pl.num_programs(1) - 1)
        def _():
            accum_chunk_loop(n_chunks)

        @pl.when(k == pl.num_programs(1) - 1)
        def _():
            full_chunks = last_valid // (_CH * _LANES)     # static
            rem = last_valid - full_chunks * _CH * _LANES  # static

            accum_chunk_loop(full_chunks)

            if rem > 0:
                # Single boundary chunk with a static mask threshold; all
                # later chunks are pure padding and are skipped statically.
                row0 = full_chunks * _CH
                x = x_ref[0, pl.ds(row0, _CH), :].astype(jnp.float32)
                t = t_ref[0, pl.ds(row0, _CH), :].astype(jnp.float32)
                row = lax.broadcasted_iota(jnp.int32, (_CH, _LANES), 0)
                lane = lax.broadcasted_iota(jnp.int32, (_CH, _LANES), 1)
                valid = (row * _LANES + lane) < rem
                xm = jnp.where(valid, x, -jnp.inf)
                d = jnp.where(valid, x - t, 0.0)
                max_acc[...] = jnp.maximum(
                    max_acc[...],
                    jnp.max(xm.reshape(_CH // _SUBLANES, _SUBLANES, _LANES),
                            axis=0))
                sse_acc[...] = sse_acc[...] + jnp.sum(
                    (d * d).reshape(_CH // _SUBLANES, _SUBLANES, _LANES),
                    axis=0)

    @pl.when(k == pl.num_programs(1) - 1)
    def _():
        maximum_value = jnp.max(max_acc[...])
        mse = jnp.sum(sse_acc[...]) * (1.0 / float(n_valid))
        psnr = 20.0 * jnp.log10(maximum_value) - 10.0 * jnp.log10(mse)
        o_ref[...] = psnr.reshape(1, 1, 1)


def _psnr_large_call(x, t, B, N, R, cols_pad, itemsize):
    tr_cap = max(_CH,
                 (_TARGET_BLOCK_BYTES // (_LANES * itemsize)) // _CH * _CH)
    tr = min(tr_cap, (R // _CH) * _CH)        # R > _SMALL_MAX_ROWS >= _CH
    K = _ceil_div(R, tr)
    needs_mask = (cols_pad != N) or (R % tr != 0)
    last_valid = N - (K - 1) * tr * _LANES    # real elements in final block

    kernel = functools.partial(
        _psnr_large_kernel, n_valid=N, needs_mask=needs_mask,
        last_valid=last_valid)
    cost = pl.CostEstimate(
        flops=4 * B * cols_pad, transcendentals=2 * B,
        bytes_accessed=2 * B * cols_pad * itemsize + 4 * B)

    out = pl.pallas_call(
        kernel,
        out_shape=jax.ShapeDtypeStruct((B, 1, 1), jnp.float32),
        grid_spec=pltpu.PrefetchScalarGridSpec(
            num_scalar_prefetch=0,
            grid=(B, K),
            in_specs=[
                pl.BlockSpec((1, tr, _LANES), lambda b, k: (b, k, 0)),
                pl.BlockSpec((1, tr, _LANES), lambda b, k: (b, k, 0)),
            ],
            out_specs=pl.BlockSpec((1, 1, 1), lambda b, k: (b, 0, 0)),
            scratch_shapes=[
                pltpu.VMEM((_SUBLANES, _LANES), jnp.float32),  # running max
                pltpu.VMEM((_SUBLANES, _LANES), jnp.float32),  # running SSE
            ],
        ),
        compiler_params=pltpu.CompilerParams(
            dimension_semantics=("parallel", "arbitrary"),
            vmem_limit_bytes=_VMEM_LIMIT_BYTES),
        cost_estimate=cost,
    )(x, t)
    return out.reshape(B)


# --------------------------------------------------------------------------
# Small (packed) path: TB batch rows per grid step, one pass, per-row reduce.
# --------------------------------------------------------------------------
def _psnr_small_kernel(x_ref, t_ref, o_ref, *, n_valid, mask_max):
    # x_ref / t_ref: (TB, R, 128) — TB whole flattened batch rows per step.
    x = x_ref[...].astype(jnp.float32)
    t = t_ref[...].astype(jnp.float32)
    d = x - t
    if mask_max:
        # Zero padding must not win the max when all real values are < 0.
        row = lax.broadcasted_iota(jnp.int32, x.shape[1:], 0)
        lane = lax.broadcasted_iota(jnp.int32, x.shape[1:], 1)
        valid = (row * _LANES + lane) < n_valid
        xm = jnp.where(valid[None, :, :], x, -jnp.inf)
    else:
        xm = x
    # diff on padding is exactly 0 (both inputs zero-padded) -> SSE is exact.
    mx = jnp.max(jnp.max(xm, axis=1), axis=-1, keepdims=True)          # (TB,1)
    sse = jnp.sum(jnp.sum(d * d, axis=1), axis=-1, keepdims=True)      # (TB,1)
    psnr = (20.0 * jnp.log10(mx)
            - 10.0 * jnp.log10(sse * (1.0 / float(n_valid))))
    o_ref[...] = psnr.reshape(1, psnr.shape[0], 1)


def _psnr_small_call(x, t, B, N, R, cols_pad, itemsize):
    TB = min(B, max(1, _PACK_TARGET_ROWS // R))
    nb = _ceil_div(B, TB)
    mask_max = cols_pad != N

    kernel = functools.partial(_psnr_small_kernel, n_valid=N,
                               mask_max=mask_max)
    cost = pl.CostEstimate(
        flops=4 * B * cols_pad, transcendentals=2 * B,
        bytes_accessed=2 * B * cols_pad * itemsize + 4 * B)

    out = pl.pallas_call(
        kernel,
        out_shape=jax.ShapeDtypeStruct((nb, TB, 1), jnp.float32),
        grid_spec=pltpu.PrefetchScalarGridSpec(
            num_scalar_prefetch=0,
            grid=(nb,),
            in_specs=[
                pl.BlockSpec((TB, R, _LANES), lambda b: (b, 0, 0)),
                pl.BlockSpec((TB, R, _LANES), lambda b: (b, 0, 0)),
            ],
            out_specs=pl.BlockSpec((1, TB, 1), lambda b: (b, 0, 0)),
        ),
        compiler_params=pltpu.CompilerParams(
            dimension_semantics=("parallel",),
            vmem_limit_bytes=_VMEM_LIMIT_BYTES),
        cost_estimate=cost,
    )(x, t)
    # Partial final batch block (if any) produces garbage rows -> sliced off.
    return out.reshape(nb * TB)[:B]


# --------------------------------------------------------------------------
# Public API
# --------------------------------------------------------------------------
def batch_psnr_pallas(input_data, target_data, reduction="mean"):
    if reduction not in ("mean", "sum", "none"):
        raise ValueError(
            f"Reduction is either `mean`, `sum` or `none`. Got {reduction}.")
    B = target_data.shape[0]
    x = input_data.reshape(B, -1)
    t = target_data.reshape(B, -1)
    N = x.shape[1]
    itemsize = jnp.dtype(x.dtype).itemsize

    R = _ceil_div(N, _LANES)                  # rows of 128 lanes per batch row
    small = R <= _SMALL_MAX_ROWS
    if small:
        # tile-align rows in the packed path (cheap: arrays are small)
        R = _round_up(R, _SUBLANES)
    cols_pad = R * _LANES

    if cols_pad != N:
        # same zero pad on both inputs => diff is exactly 0 on padding
        x = jnp.pad(x, ((0, 0), (0, cols_pad - N)))
        t = jnp.pad(t, ((0, 0), (0, cols_pad - N)))
    x = x.reshape(B, R, _LANES)
    t = t.reshape(B, R, _LANES)

    if small:
        psnrs = _psnr_small_call(x, t, B, N, R, cols_pad, itemsize)
    else:
        psnrs = _psnr_large_call(x, t, B, N, R, cols_pad, itemsize)

    if reduction == "mean":
        return psnrs.mean()
    if reduction == "sum":
        return psnrs.sum()
    return psnrs


class PSNRLoss:
    """JAX/Pallas port of direct.functionals.psnr.PSNRLoss."""

    def __init__(self, reduction="mean"):
        self.reduction = reduction

    def __call__(self, input_data, target_data):
        return batch_psnr_pallas(input_data, target_data,
                                 reduction=self.reduction)


def _batch_psnr_ref(input_data, target_data, reduction="mean"):
    B = target_data.shape[0]
    x = input_data.reshape(B, -1)
    t = target_data.reshape(B, -1)
    maximum_value = jnp.max(x, axis=1)
    mse = jnp.mean((x - t) ** 2, axis=1)
    psnrs = 20.0 * jnp.log10(maximum_value) - 10.0 * jnp.log10(mse)
    if reduction == "mean":
        return psnrs.mean()
    if reduction == "sum":
        return psnrs.sum()
    return psnrs


if __name__ == "__main__":
    key = jax.random.PRNGKey(0)
    ks = jax.random.split(key, 8)

    # 1) packed small path, lane-aligned: batch=2, channels=4, spatial=16
    x = jax.random.uniform(ks[0], (2, 4, 16, 16), dtype=jnp.float32) + 0.5
    t = x + 0.05 * jax.random.normal(ks[1], (2, 4, 16, 16), dtype=jnp.float32)
    loss = PSNRLoss(reduction="mean")
    out = jax.block_until_ready(loss(x, t))
    ref = _batch_psnr_ref(x, t, reduction="mean")
    assert jnp.allclose(out, ref, rtol=1e-4, atol=1e-4), (out, ref)

    # 2) packed small path, unaligned N=300 (lane padding + max mask)
    x2 = jax.random.uniform(ks[2], (2, 3, 10, 10), dtype=jnp.float32) + 0.5
    t2 = x2 + 0.05 * jax.random.normal(ks[3], (2, 3, 10, 10),
                                       dtype=jnp.float32)
    out2 = jax.block_until_ready(batch_psnr_pallas(x2, t2, reduction="none"))
    ref2 = _batch_psnr_ref(x2, t2, reduction="none")
    assert jnp.allclose(out2, ref2, rtol=1e-4, atol=1e-4), (out2, ref2)

    # 3) streaming path, K=2, masked final block (N per row = 320000)
    x3 = jax.random.uniform(ks[4], (2, 2, 400, 400), dtype=jnp.float32) + 0.5
    t3 = x3 + 0.05 * jax.random.normal(ks[5], (2, 2, 400, 400),
                                       dtype=jnp.float32)
    out3 = jax.block_until_ready(batch_psnr_pallas(x3, t3, reduction="none"))
    ref3 = _batch_psnr_ref(x3, t3, reduction="none")
    assert jnp.allclose(out3, ref3, rtol=1e-4, atol=1e-4), (out3, ref3)

    # 4) streaming path, single fully-aligned block (no mask emitted)
    x4 = jax.random.uniform(ks[6], (1, 8, 256, 256), dtype=jnp.float32) + 0.5
    t4 = x4 + 0.05 * jax.random.normal(ks[7], (1, 8, 256, 256),
                                       dtype=jnp.float32)
    out4 = jax.block_until_ready(batch_psnr_pallas(x4, t4, reduction="sum"))
    ref4 = _batch_psnr_ref(x4, t4, reduction="sum")
    assert jnp.allclose(out4, ref4, rtol=1e-4, atol=1e-4), (out4, ref4)

    print("KERNEL_OK")
</pallas_src>

<mosaic_0001>
module attributes {stable_mosaic.version = 11 : i64} {
  func.func @_psnr_small_kernel(%arg0: i32, %arg1: memref<2x8x128xf32, #tpu.memory_space<vmem>>, %arg2: memref<2x8x128xf32, #tpu.memory_space<vmem>>, %arg3: memref<1x2x1xf32, #tpu.memory_space<vmem>>) attributes {dimension_semantics = [#tpu.dimension_semantics<parallel>], iteration_bounds = array<i64: 1>, scalar_prefetch = 0 : i64, scratch_operands = 0 : i64, tpu.core_type = #tpu.core_type<tc>, window_params = [{transform_indices = @transform_0, window_bounds = array<i64: 2, 8, 128>}, {transform_indices = @transform_1, window_bounds = array<i64: 2, 8, 128>}, {transform_indices = @transform_2, window_bounds = array<i64: 1, 2, 1>}]} {
    %c0 = arith.constant 0 : index
    %c0_0 = arith.constant 0 : index
    %c0_1 = arith.constant 0 : index
    %0 = vector.load %arg1[%c0, %c0_0, %c0_1] : memref<2x8x128xf32, #tpu.memory_space<vmem>>, vector<2x8x128xf32>
    %c0_2 = arith.constant 0 : index
    %c0_3 = arith.constant 0 : index
    %c0_4 = arith.constant 0 : index
    %1 = vector.load %arg2[%c0_2, %c0_3, %c0_4] : memref<2x8x128xf32, #tpu.memory_space<vmem>>, vector<2x8x128xf32>
    %2 = arith.subf %0, %1 : vector<2x8x128xf32>
    %cst = arith.constant dense<0xFF800000> : vector<2x128xf32>
    %3 = vector.multi_reduction <maximumf>, %0, %cst [1] : vector<2x8x128xf32> to vector<2x128xf32>
    %cst_5 = arith.constant dense<0xFF800000> : vector<2xf32>
    %4 = vector.multi_reduction <maximumf>, %3, %cst_5 [1] : vector<2x128xf32> to vector<2xf32>
    %5 = vector.shape_cast %4 : vector<2xf32> to vector<2x1xf32>
    %6 = arith.mulf %2, %2 : vector<2x8x128xf32>
    %cst_6 = arith.constant dense<0.000000e+00> : vector<2x128xf32>
    %7 = vector.multi_reduction <add>, %6, %cst_6 [1] : vector<2x8x128xf32> to vector<2x128xf32>
    %cst_7 = arith.constant dense<0.000000e+00> : vector<2xf32>
    %8 = vector.multi_reduction <add>, %7, %cst_7 [1] : vector<2x128xf32> to vector<2xf32>
    %9 = vector.shape_cast %8 : vector<2xf32> to vector<2x1xf32>
    %10 = math.log %5 : vector<2x1xf32>
    %cst_8 = arith.constant 0.434294492 : f32
    %11 = vector.broadcast %cst_8 : f32 to vector<2x1xf32>
    %12 = arith.mulf %10, %11 : vector<2x1xf32>
    %cst_9 = arith.constant 2.000000e+01 : f32
    %13 = vector.broadcast %cst_9 : f32 to vector<2x1xf32>
    %14 = arith.mulf %13, %12 : vector<2x1xf32>
    %cst_10 = arith.constant 9.765625E-4 : f32
    %15 = vector.broadcast %cst_10 : f32 to vector<2x1xf32>
    %16 = arith.mulf %9, %15 : vector<2x1xf32>
    %17 = math.log %16 : vector<2x1xf32>
    %cst_11 = arith.constant 0.434294492 : f32
    %18 = vector.broadcast %cst_11 : f32 to vector<2x1xf32>
    %19 = arith.mulf %17, %18 : vector<2x1xf32>
    %cst_12 = arith.constant 1.000000e+01 : f32
    %20 = vector.broadcast %cst_12 : f32 to vector<2x1xf32>
    %21 = arith.mulf %20, %19 : vector<2x1xf32>
    %22 = arith.subf %14, %21 : vector<2x1xf32>
    %23 = vector.shape_cast %22 : vector<2x1xf32> to vector<1x2x1xf32>
    %c0_13 = arith.constant 0 : index
    %c0_14 = arith.constant 0 : index
    %c0_15 = arith.constant 0 : index
    %24 = vector.load %arg3[%c0_13, %c0_14, %c0_15] : memref<1x2x1xf32, #tpu.memory_space<vmem>>, vector<1x2x1xf32>
    tpu.vector_store %arg3[%c0_13, %c0_14, %c0_15], %23 {strides = array<i32>} : memref<1x2x1xf32, #tpu.memory_space<vmem>>, vector<1x2x1xf32>,
    return
  }
  func.func @transform_0(%arg0: i32) -> (i32, i32, i32) {
    %c0_i32 = arith.constant 0 : i32
    %c0_i32_0 = arith.constant 0 : i32
    %c0_i32_1 = arith.constant 0 : i32
    return %arg0, %c0_i32, %c0_i32_0 : i32, i32, i32
  }
  func.func @transform_1(%arg0: i32) -> (i32, i32, i32) {
    %c0_i32 = arith.constant 0 : i32
    %c0_i32_0 = arith.constant 0 : i32
    %c0_i32_1 = arith.constant 0 : i32
    return %arg0, %c0_i32, %c0_i32_0 : i32, i32, i32
  }
  func.func @transform_2(%arg0: i32) -> (i32, i32, i32) {
    %c0_i32 = arith.constant 0 : i32
    %c0_i32_0 = arith.constant 0 : i32
    %c0_i32_1 = arith.constant 0 : i32
    return %arg0, %c0_i32, %c0_i32_0 : i32, i32, i32
  }
}

</mosaic_0001>

<llo_original>
// kernel: tpu_custom_call.1
$region0: #{tpu_custom_call.1}
  #allocation0 [shape = 'u32[]', space=smem, size = 0x4, offset = 0x4, fixed_abs, tag = 'smem constant byte address 0x4 - core index']
  #allocation1 [shape = 'u32[144,128]{1,0:T(1,128)}', space=vmem, size = 0x12000, scoped, tag = 'internal scratch']
  %s0 = inlined_call_operand.hbm [shape: f32[2,8,128], index: 0, kind: input, shape index: {}]
  %s1 = inlined_call_operand.hbm [shape: f32[2,8,128], index: 1, kind: input, shape index: {}]
  %s2 = inlined_call_operand.vmem [shape: f32[1,2,1], index: 2, kind: output, shape index: {}]
  %s3 = sld [smem:[#allocation0]]
  $region26: #{tpu_custom_call.1} parent=0
    _
  %s5 = ssub.s32 1, %s3
  %s6 = scalar_select 0, %s5, %s3
  $region1: #{tpu_custom_call.1} parent=0
    #allocation2 [shape = 'u8[8192]{0}', space=vmem, size = 0x2000, scoped, tag = 'input window, operand 0, single buffered']
    #allocation3 [shape = 's32[1]{0}', space=sflag, size = 0x4, scoped, tag = 'scoped memory for tpu_custom_call.1']
    #allocation4 [shape = 'u8[8192]{0}', space=vmem, size = 0x2000, scoped, tag = 'input window, operand 1, single buffered']
    #allocation5 [shape = 's32[1]{0}', space=sflag, size = 0x4, scoped, tag = 'scoped memory for tpu_custom_call.1']
    %7 = vsyncpa [#allocation3], 0
    %8 = vsyncpa [#allocation5], 0
    // Predicated region
    $region2: #{tpu_custom_call.1} parent=1 // pred_check
      _
    $region3: #{tpu_custom_call.1} parent=1 // pred_check_branch
      %10 = sbr.rel (0) target = $region5
    $region4: #{tpu_custom_call.1} parent=1 // pred_region
      %s12 = ssub.s32 256, 256
      %13 = vsyncadd [#allocation3], %s12
      %s14 = sshll.u32 [#allocation2], 4
      %s15 = int_to_ptr.vmem [resolvable:$true] %s14
      %20 = dma.hbm_to_vmem [thread:$0]  %s0, 256, %s15, [#allocation3], 128, 128, 8
    $region5: #{tpu_custom_call.1} parent=1 // pred_fallthru
      _
    // Predicated region
    $region6: #{tpu_custom_call.1} parent=1 // pred_check
      _
    $region7: #{tpu_custom_call.1} parent=1 // pred_check_branch
      %22 = sbr.rel (0) target = $region9
    $region8: #{tpu_custom_call.1} parent=1 // pred_region
      %s24 = ssub.s32 256, 256
      %25 = vsyncadd [#allocation5], %s24
      %s26 = sshll.u32 [#allocation4], 4
      %s27 = int_to_ptr.vmem [resolvable:$true] %s26
      %32 = dma.hbm_to_vmem [thread:$0]  %s1, 256, %s27, [#allocation5], 128, 128, 8
    $region9: #{tpu_custom_call.1} parent=1 // pred_fallthru
      _
    // Predicated region
    $region10: #{tpu_custom_call.1} parent=1 // pred_check
      _
    $region11: #{tpu_custom_call.1} parent=1 // pred_check_branch
      %34 = sbr.rel (0) target = $region13
    $region12: #{tpu_custom_call.1} parent=1 // pred_region
      %35 = dma.done [#allocation3], 256
    $region13: #{tpu_custom_call.1} parent=1 // pred_fallthru
      _
    // Predicated region
    $region14: #{tpu_custom_call.1} parent=1 // pred_check
      _
    $region15: #{tpu_custom_call.1} parent=1 // pred_check_branch
      %37 = sbr.rel (0) target = $region17
    $region16: #{tpu_custom_call.1} parent=1 // pred_region
      %38 = dma.done [#allocation5], 256
    $region17: #{tpu_custom_call.1} parent=1 // pred_fallthru
      _
    %v39 = vld [vmem:[#allocation2] sm:$0xff]
    %v40 = vld [vmem:[#allocation2 + $0x8] sm:$0xff]
    %v41 = vld [vmem:[#allocation4] sm:$0xff]
    %v42 = vld [vmem:[#allocation4 + $0x8] sm:$0xff]
    %v43 = vsub.f32 %v39, %v41
    %v44 = vsub.f32 %v40, %v42
    %v45 = vrot.slane %v39, 4
    %v46 = vmax.f32 %v39, %v45
    %v47 = vrot.slane %v46, 2
    %v48 = vmax.f32 %v46, %v47
    %v49 = vrot.slane %v48, 1
    %v50 = vmax.f32 %v48, %v49
    %v51 = vrot.slane %v40, 4
    %v52 = vmax.f32 %v40, %v51
    %v53 = vrot.slane %v52, 2
    %v54 = vmax.f32 %v52, %v53
    %v55 = vrot.slane %v54, 1
    %v56 = vmax.f32 %v54, %v55
    %vm59 = vcmask 1041409
    %v60 = vsel %vm59, %v56, %v50
    %vm62 = vcmask 1041408
    %v63 = vsel %vm62, %v60, -inf
    %64 = vmax.xlane.f32.xlu0 %v63
    %v65 = vpop.xlane.xlu0 %64
    %v66 = vmul.f32 %v43, %v43
    %v67 = vmul.f32 %v44, %v44
    %v68 = vrot.slane %v66, 4
    %v69 = vadd.f32 %v66, %v68
    %v70 = vrot.slane %v69, 2
    %v71 = vadd.f32 %v69, %v70
    %v72 = vrot.slane %v71, 1
    %v73 = vadd.f32 %v71, %v72
    %v74 = vrot.slane %v67, 4
    %v75 = vadd.f32 %v67, %v74
    %v76 = vrot.slane %v75, 2
    %v77 = vadd.f32 %v75, %v76
    %v78 = vrot.slane %v77, 1
    %v79 = vadd.f32 %v77, %v78
    %v82 = vsel %vm59, %v79, %v73
    %v84 = vsel %vm62, %v82, 0.0
    %85 = vadd.xlane.f32.xlu0 %v84
    %v86 = vpop.xlane.xlu0 %85
    %v87 = vlog2.pop %v65
    %v88 = vmul.f32 %v87, 0.6931472
    %v89 = vmul.f32 %v88, 0.4342945
    %v90 = vmul.f32 %v89, 20.0
    %v91 = vmul.f32 %v86, 0.0009765625
    %v92 = vlog2.pop %v91
    %v93 = vmul.f32 %v92, 0.6931472
    %v94 = vmul.f32 %v93, 0.4342945
    %v95 = vmul.f32 %v94, 10.0
    %v96 = vsub.f32 %v90, %v95
    %vm97 = vcmask 1024
    %98 = vst.msk [vmem:[%s2] sm:$0x3] %vm97, %v96
    // Predicated region
    $region18: #{tpu_custom_call.1} parent=1 // pred_check
      _
    $region19: #{tpu_custom_call.1} parent=1 // pred_check_branch
      %100 = sbr.rel (0) target = $region21
    $region20: #{tpu_custom_call.1} parent=1 // pred_region
      _
    $region21: #{tpu_custom_call.1} parent=1 // pred_fallthru
      _
    // Predicated region
    $region22: #{tpu_custom_call.1} parent=1 // pred_check
      _
    $region23: #{tpu_custom_call.1} parent=1 // pred_check_branch
      %102 = sbr.rel (0) target = $region25
    $region24: #{tpu_custom_call.1} parent=1 // pred_region
      _
    $region25: #{tpu_custom_call.1} parent=1 // pred_fallthru
      _
    %103 = vsyncpa [#allocation3], 1
    %104 = vsyncpa [#allocation5], 1

</llo_original>
